<compile_context>
chip_gen: v7x
topology: tpu7x:2x2x1
jax: 0.10.0
libtpu: 0.0.40
codegen_flags: <defaults>
</compile_context>

<pallas_src>
import functools

import jax
import jax.numpy as jnp
from jax.experimental import pallas as pl
from jax.experimental.pallas import tpu as pltpu


def channel_attention_kernel(hw_total, hw_chunk,
                             x_ref, w1_ref, b1_ref, w2_ref, b2_ref,
                             o_ref, sum_ref, max_ref):
    """One (batch-tile i, spatial-chunk k) grid step.

    x_ref             : (bt, C, hw_chunk) streamed chunk, original input dtype
    w1/b1/w2/b2       : resident MLP params (f32)
    o_ref             : (bt, C) f32 output block (array is (B, 1, C), squeezed)
    sum_ref / max_ref : (bt, C) f32 running accumulators (persist over k)
    """
    k = pl.program_id(1)
    last = pl.num_programs(1) - 1

    @pl.when(k == 0)
    def _init():
        sum_ref[...] = jnp.zeros_like(sum_ref)
        max_ref[...] = jnp.full_like(max_ref, -jnp.inf)

    def accumulate(width):
        # `width` is a *static* Python int: number of valid spatial positions in
        # this chunk.  A static prefix slice means OOB lanes of the final
        # (ragged) block are simply never read -- no iota / where masking in the
        # hot loop (review #2).  Upcast is in-register; HBM copy keeps x dtype.
        xv = x_ref[:, :, :width].astype(jnp.float32)         # (bt, C, width)
        sum_ref[...] = sum_ref[...] + jnp.sum(xv, axis=-1)
        max_ref[...] = jnp.maximum(max_ref[...], jnp.max(xv, axis=-1))

    tail = hw_total % hw_chunk
    if tail == 0:
        accumulate(hw_chunk)            # every chunk is full: single unmasked path
    else:
        @pl.when(k < last)
        def _full_chunk():
            accumulate(hw_chunk)        # hot path: unmasked

        @pl.when(k == last)
        def _ragged_chunk():
            accumulate(tail)            # ragged tail: static valid prefix only

    # Epilogue: fused MLP on stacked [avg ; max] (one pair of matmuls) + sigmoid.
    @pl.when(k == last)
    def _epilogue():
        bt = o_ref.shape[0]
        avg = sum_ref[...] * (1.0 / hw_total)                 # AdaptiveAvgPool2d(1)
        mx = max_ref[...]                                     # AdaptiveMaxPool2d(1)
        v = jnp.concatenate([avg, mx], axis=0)                # (2*bt, C)
        h = jnp.dot(v, w1_ref[...], preferred_element_type=jnp.float32) + b1_ref[...]
        h = jnp.maximum(h, 0.0)                               # ReLU
        y = jnp.dot(h, w2_ref[...], preferred_element_type=jnp.float32) + b2_ref[...]
        out = y[:bt, :] + y[bt:, :]                           # avg branch + max branch
        o_ref[...] = jax.nn.sigmoid(out).astype(o_ref.dtype)


_MAX_LANE_CHUNK = 8192     # cap on the spatial chunk (lanes) per block
_BLOCK_TARGET = 8 << 20    # ~8 MiB per input block: >= the ~1MiB 85%-roofline
                           # plateau; keeps per-step overhead ~10% even on v7x.


def _usable_vmem_bytes():
    """~85% of the physical per-core VMEM (generation-aware; review #3)."""
    cap = 64 << 20                          # conservative default = v7x per-TC VMEM
    try:
        cap = int(getattr(pltpu.get_tpu_info(), "vmem_capacity_bytes", cap))
    except Exception:
        pass
    return int(cap * 0.85)


def _pick_hw_chunk(hw, c, itemsize, block_budget):
    """Largest spatial chunk: full extent if it fits, else a 128-aligned chunk."""
    if hw <= _MAX_LANE_CHUNK and c * hw * itemsize <= block_budget:
        return hw
    if hw < 128:
        return hw
    chunk = min(hw - hw % 128, _MAX_LANE_CHUNK)
    while chunk > 128 and c * chunk * itemsize > block_budget:
        chunk = max(128, (chunk // 2) // 128 * 128)
    return chunk


def _pick_batch_tile(b, c, hw_chunk, itemsize, block_budget):
    """Largest divisor of B whose block fits the budget; prefer bt <= B//2 so the
    "parallel" grid axis has >= 2 iterations (both v7x TensorCores busy,
    review #1).  Any divisor is legal: bt is only ever a *leading* block dim."""
    def fits(bt):
        return bt * c * hw_chunk * itemsize <= block_budget

    divisors = [d for d in range(b, 0, -1) if b % d == 0]
    fitting = [d for d in divisors if fits(d)]
    if not fitting:
        # Only possible for absurd C (> several thousand at a 128-lane chunk).
        return 1
    multi_tile = [d for d in fitting if d <= b // 2]
    return multi_tile[0] if multi_tile else fitting[0]


def channel_attention(x_nchw, w1, b1, w2, b2, *, hw_chunk=None):
    """Pallas ChannelAttention forward.

    x_nchw : (B, C, H, W) input (f32 or bf16; kept in its own dtype in HBM)
    w1, b1 : (C, Cr), (Cr,)  first Linear (weights stored as (in, out))
    w2, b2 : (Cr, C), (C,)   second Linear
    Returns (B, C) f32 sigmoid channel-attention weights.
    """
    b, c, h, w = x_nchw.shape
    hw = h * w
    cr = w1.shape[1]
    x = x_nchw.reshape(b, c, hw)                    # keep input dtype (bf16 stays bf16)
    itemsize = jnp.dtype(x.dtype).itemsize

    usable_vmem = _usable_vmem_bytes()
    block_budget = max(1 << 20, min(_BLOCK_TARGET, (usable_vmem - (16 << 20)) // 2))

    if hw_chunk is None:
        hw_chunk = _pick_hw_chunk(hw, c, itemsize, block_budget)
    assert hw_chunk == hw or hw_chunk % 128 == 0, "hw_chunk must be lane-aligned"
    bt = _pick_batch_tile(b, c, hw_chunk, itemsize, block_budget)
    assert b % bt == 0

    grid = (b // bt, pl.cdiv(hw, hw_chunk))

    # Explicit VMEM budget: double-buffered x block + resident params + scratch +
    # headroom, capped at ~85% of the physical per-core VMEM (review #3/#4).
    x_block_bytes = bt * c * hw_chunk * itemsize
    param_bytes = 4 * (c * cr + cr + cr * c + c)
    scratch_bytes = 2 * max(bt, 8) * max(c, 128) * 4
    vmem_need = 2 * x_block_bytes + 2 * param_bytes + scratch_bytes + (4 << 20)
    vmem_limit = int(min(max(vmem_need, 8 << 20), usable_vmem))

    kernel = functools.partial(channel_attention_kernel, hw, hw_chunk)

    out = pl.pallas_call(
        kernel,
        out_shape=jax.ShapeDtypeStruct((b, 1, c), jnp.float32),
        grid_spec=pltpu.PrefetchScalarGridSpec(
            num_scalar_prefetch=0,
            grid=grid,
            in_specs=[
                # Streamed activation chunks (double-buffered by Pallas).
                pl.BlockSpec((bt, c, hw_chunk), lambda i, k: (i, 0, k)),
                # Params: constant index_map -> resident across the whole sweep.
                pl.BlockSpec((c, cr), lambda i, k: (0, 0)),
                pl.BlockSpec((1, cr), lambda i, k: (0, 0)),
                pl.BlockSpec((cr, c), lambda i, k: (0, 0)),
                pl.BlockSpec((1, c), lambda i, k: (0, 0)),
            ],
            # (B, 1, C) output: the constrained last-two block dims (1, C) are
            # full extent, so ANY divisor of B is a legal batch tile; the
            # singleton dim is squeezed out of the kernel-visible ref.
            out_specs=pl.BlockSpec((bt, None, c), lambda i, k: (i, 0, 0)),
            scratch_shapes=[
                pltpu.VMEM((bt, c), jnp.float32),    # running sum
                pltpu.VMEM((bt, c), jnp.float32),    # running max
            ],
        ),
        compiler_params=pltpu.CompilerParams(
            # "parallel" on the batch-tile axis shards it across TensorCores on
            # multi-TC parts (v7x); the spatial-reduction axis must stay
            # "arbitrary" (accumulators/output are revisited across it).
            dimension_semantics=("parallel", "arbitrary"),
            vmem_limit_bytes=vmem_limit,
        ),
    )(x, w1, b1.reshape(1, -1), w2, b2.reshape(1, -1))
    return out.reshape(b, c)


def init_params(key, in_channels, reduction_ratio=16):
    reduced = max(1, in_channels // reduction_ratio)
    k1, k2, k3, k4 = jax.random.split(key, 4)
    bound1 = 1.0 / (in_channels ** 0.5)
    bound2 = 1.0 / (reduced ** 0.5)
    # Weights stored pre-transposed as (in, out): two plain matmuls in-kernel.
    w1 = jax.random.uniform(k1, (in_channels, reduced), jnp.float32, -bound1, bound1)
    b1 = jax.random.uniform(k2, (reduced,), jnp.float32, -bound1, bound1)
    w2 = jax.random.uniform(k3, (reduced, in_channels), jnp.float32, -bound2, bound2)
    b2 = jax.random.uniform(k4, (in_channels,), jnp.float32, -bound2, bound2)
    return w1, b1, w2, b2


def reference(x_nchw, w1, b1, w2, b2):
    b, c, h, w = x_nchw.shape
    flat = x_nchw.reshape(b, c, h * w).astype(jnp.float32)
    avg = jnp.mean(flat, axis=-1)
    mx = jnp.max(flat, axis=-1)

    def mlp(v):
        return jnp.maximum(v @ w1 + b1, 0.0) @ w2 + b2

    return jax.nn.sigmoid(mlp(avg) + mlp(mx))


if __name__ == "__main__":
    key = jax.random.PRNGKey(0)
    kx, kp, kx2, kp2 = jax.random.split(key, 4)

    # Test 1: small NCHW f32 input matching the module defaults (C=4, ratio=16).
    B, C, H, W = 2, 4, 16, 16
    x = jax.random.normal(kx, (B, C, H, W), jnp.float32)
    w1, b1, w2, b2 = init_params(kp, in_channels=C, reduction_ratio=16)
    out = jax.block_until_ready(channel_attention(x, w1, b1, w2, b2))
    ref = reference(x, w1, b1, w2, b2)
    assert out.shape == (B, C)
    assert jnp.allclose(out, ref, atol=2e-5, rtol=2e-5), (out, ref)

    # Test 2: streamed multi-chunk path with a ragged (pl.when-gated) tail,
    # bf16 kept as bf16 in HBM, and a batch-tile ("parallel") axis with >= 2
    # iterations.  HW = 2304 = 2*1024 + 256 with hw_chunk=1024.
    B2, C2, H2, W2 = 2, 16, 48, 48
    x2 = jax.random.normal(kx2, (B2, C2, H2, W2), jnp.float32).astype(jnp.bfloat16)
    p2 = init_params(kp2, in_channels=C2, reduction_ratio=4)
    out2 = jax.block_until_ready(channel_attention(x2, *p2, hw_chunk=1024))
    ref2 = reference(x2.astype(jnp.float32), *p2)
    assert out2.shape == (B2, C2)
    assert jnp.allclose(out2, ref2, atol=2e-5, rtol=2e-5), (out2, ref2)

    print("KERNEL_OK")
</pallas_src>

<mosaic_0001>
module attributes {stable_mosaic.version = 11 : i64} {
  func.func @channel_attention_kernel(%arg0: i32, %arg1: i32, %arg2: memref<1x4x256xf32, #tpu.memory_space<vmem>>, %arg3: memref<4x1xf32, #tpu.memory_space<vmem>>, %arg4: memref<1x1xf32, #tpu.memory_space<vmem>>, %arg5: memref<1x4xf32, #tpu.memory_space<vmem>>, %arg6: memref<1x4xf32, #tpu.memory_space<vmem>>, %arg7: memref<1x1x4xf32, #tpu.memory_space<vmem>>, %arg8: memref<1x4xf32, #tpu.memory_space<vmem>>, %arg9: memref<1x4xf32, #tpu.memory_space<vmem>>) attributes {dimension_semantics = [#tpu.dimension_semantics<parallel>, #tpu.dimension_semantics<arbitrary>], iteration_bounds = array<i64: 2, 1>, scalar_prefetch = 0 : i64, scratch_operands = 2 : i64, tpu.core_type = #tpu.core_type<tc>, window_params = [{transform_indices = @transform_0, window_bounds = array<i64: 1, 4, 256>}, {pipeline_mode = #tpu.pipeline_mode<synchronous>, transform_indices = @transform_1, window_bounds = array<i64: 4, 1>}, {pipeline_mode = #tpu.pipeline_mode<synchronous>, transform_indices = @transform_2, window_bounds = array<i64: 1, 1>}, {pipeline_mode = #tpu.pipeline_mode<synchronous>, transform_indices = @transform_3, window_bounds = array<i64: 1, 4>}, {pipeline_mode = #tpu.pipeline_mode<synchronous>, transform_indices = @transform_4, window_bounds = array<i64: 1, 4>}, {transform_indices = @transform_5, window_bounds = array<i64: 1, 1, 4>}]} {
    %c0_i32 = arith.constant 0 : i32
    %0 = arith.cmpi eq, %arg1, %c0_i32 : i32
    %1 = arith.extui %0 : i1 to i32
    %c0_i32_0 = arith.constant 0 : i32
    %2 = arith.cmpi ne, %1, %c0_i32_0 : i32
    scf.if %2 {
      %cst_14 = arith.constant 0.000000e+00 : f32
      %15 = vector.broadcast %cst_14 : f32 to vector<1x4xf32>
      %c0_15 = arith.constant 0 : index
      %c0_16 = arith.constant 0 : index
      %16 = vector.load %arg8[%c0_15, %c0_16] : memref<1x4xf32, #tpu.memory_space<vmem>>, vector<1x4xf32>
      tpu.vector_store %arg8[%c0_15, %c0_16], %15 {strides = array<i32>} : memref<1x4xf32, #tpu.memory_space<vmem>>, vector<1x4xf32>,
      %cst_17 = arith.constant 0xFF800000 : f32
      %17 = vector.broadcast %cst_17 : f32 to vector<1x4xf32>
      %c0_18 = arith.constant 0 : index
      %c0_19 = arith.constant 0 : index
      %18 = vector.load %arg9[%c0_18, %c0_19] : memref<1x4xf32, #tpu.memory_space<vmem>>, vector<1x4xf32>
      tpu.vector_store %arg9[%c0_18, %c0_19], %17 {strides = array<i32>} : memref<1x4xf32, #tpu.memory_space<vmem>>, vector<1x4xf32>,
    } else {
    }
    %c0 = arith.constant 0 : index
    %c0_1 = arith.constant 0 : index
    %c0_2 = arith.constant 0 : index
    %3 = vector.load %arg2[%c0, %c0_1, %c0_2] : memref<1x4x256xf32, #tpu.memory_space<vmem>>, vector<1x4x256xf32>
    %c0_3 = arith.constant 0 : index
    %c0_4 = arith.constant 0 : index
    %4 = vector.load %arg8[%c0_3, %c0_4] : memref<1x4xf32, #tpu.memory_space<vmem>>, vector<1x4xf32>
    %cst = arith.constant dense<0.000000e+00> : vector<1x4xf32>
    %5 = vector.multi_reduction <add>, %3, %cst [2] : vector<1x4x256xf32> to vector<1x4xf32>
    %6 = arith.addf %4, %5 : vector<1x4xf32>
    %c0_5 = arith.constant 0 : index
    %c0_6 = arith.constant 0 : index
    %7 = vector.load %arg8[%c0_5, %c0_6] : memref<1x4xf32, #tpu.memory_space<vmem>>, vector<1x4xf32>
    tpu.vector_store %arg8[%c0_5, %c0_6], %6 {strides = array<i32>} : memref<1x4xf32, #tpu.memory_space<vmem>>, vector<1x4xf32>,
    %c0_7 = arith.constant 0 : index
    %c0_8 = arith.constant 0 : index
    %8 = vector.load %arg9[%c0_7, %c0_8] : memref<1x4xf32, #tpu.memory_space<vmem>>, vector<1x4xf32>
    %cst_9 = arith.constant dense<0xFF800000> : vector<1x4xf32>
    %9 = vector.multi_reduction <maximumf>, %3, %cst_9 [2] : vector<1x4x256xf32> to vector<1x4xf32>
    %10 = arith.maximumf %8, %9 : vector<1x4xf32>
    %c0_10 = arith.constant 0 : index
    %c0_11 = arith.constant 0 : index
    %11 = vector.load %arg9[%c0_10, %c0_11] : memref<1x4xf32, #tpu.memory_space<vmem>>, vector<1x4xf32>
    tpu.vector_store %arg9[%c0_10, %c0_11], %10 {strides = array<i32>} : memref<1x4xf32, #tpu.memory_space<vmem>>, vector<1x4xf32>,
    %c0_i32_12 = arith.constant 0 : i32
    %12 = arith.cmpi eq, %arg1, %c0_i32_12 : i32
    %13 = arith.extui %12 : i1 to i32
    %c0_i32_13 = arith.constant 0 : i32
    %14 = arith.cmpi ne, %13, %c0_i32_13 : i32
    scf.if %14 {
      %c0_14 = arith.constant 0 : index
      %c0_15 = arith.constant 0 : index
      %15 = vector.load %arg8[%c0_14, %c0_15] : memref<1x4xf32, #tpu.memory_space<vmem>>, vector<1x4xf32>
      %cst_16 = arith.constant 3.906250e-03 : f32
      %16 = vector.broadcast %cst_16 : f32 to vector<1x4xf32>
      %17 = arith.mulf %15, %16 : vector<1x4xf32>
      %c0_17 = arith.constant 0 : index
      %c0_18 = arith.constant 0 : index
      %18 = vector.load %arg9[%c0_17, %c0_18] : memref<1x4xf32, #tpu.memory_space<vmem>>, vector<1x4xf32>
      %19 = tpu.concatenate %17, %18 in 0 : vector<1x4xf32>, vector<1x4xf32> -> vector<2x4xf32>
      %c0_19 = arith.constant 0 : index
      %c0_20 = arith.constant 0 : index
      %20 = vector.load %arg3[%c0_19, %c0_20] : memref<4x1xf32, #tpu.memory_space<vmem>>, vector<4x1xf32>
      %cst_21 = arith.constant dense<0.000000e+00> : vector<2x1xf32>
      %21 = tpu.matmul %19, %20, %cst_21 {dimension_numbers = #tpu.dot_dimension_numbers<[1], [0], [0], [1], [0, 0, 1, 1], [], []>} : vector<2x4xf32>, vector<4x1xf32>, vector<2x1xf32> -> vector<2x1xf32>
      %c0_22 = arith.constant 0 : index
      %c0_23 = arith.constant 0 : index
      %22 = vector.load %arg4[%c0_22, %c0_23] : memref<1x1xf32, #tpu.memory_space<vmem>>, vector<1x1xf32>
      %23 = vector.broadcast %22 : vector<1x1xf32> to vector<2x1xf32>
      %24 = arith.addf %21, %23 : vector<2x1xf32>
      %cst_24 = arith.constant 0.000000e+00 : f32
      %25 = vector.broadcast %cst_24 : f32 to vector<2x1xf32>
      %26 = arith.maximumf %24, %25 : vector<2x1xf32>
      %c0_25 = arith.constant 0 : index
      %c0_26 = arith.constant 0 : index
      %27 = vector.load %arg5[%c0_25, %c0_26] : memref<1x4xf32, #tpu.memory_space<vmem>>, vector<1x4xf32>
      %cst_27 = arith.constant dense<0.000000e+00> : vector<2x4xf32>
      %28 = tpu.matmul %26, %27, %cst_27 {dimension_numbers = #tpu.dot_dimension_numbers<[1], [0], [0], [1], [0, 0, 1, 1], [], []>} : vector<2x1xf32>, vector<1x4xf32>, vector<2x4xf32> -> vector<2x4xf32>
      %c0_28 = arith.constant 0 : index
      %c0_29 = arith.constant 0 : index
      %29 = vector.load %arg6[%c0_28, %c0_29] : memref<1x4xf32, #tpu.memory_space<vmem>>, vector<1x4xf32>
      %30 = vector.broadcast %29 : vector<1x4xf32> to vector<2x4xf32>
      %31 = arith.addf %28, %30 : vector<2x4xf32>
      %32 = vector.extract_strided_slice %31 {offsets = [0, 0], sizes = [1, 4], strides = [1, 1]} : vector<2x4xf32> to vector<1x4xf32>
      %33 = vector.extract_strided_slice %31 {offsets = [1, 0], sizes = [1, 4], strides = [1, 1]} : vector<2x4xf32> to vector<1x4xf32>
      %34 = arith.addf %32, %33 : vector<1x4xf32>
      %35 = arith.negf %34 : vector<1x4xf32>
      %36 = math.exp %35 : vector<1x4xf32>
      %cst_30 = arith.constant 1.000000e+00 : f32
      %37 = vector.broadcast %cst_30 : f32 to vector<1x4xf32>
      %38 = arith.addf %37, %36 : vector<1x4xf32>
      %39 = arith.divf %37, %38 : vector<1x4xf32>
      %c0_31 = arith.constant 0 : index
      %c0_32 = arith.constant 0 : index
      %c0_33 = arith.constant 0 : index
      %40 = vector.load %arg7[%c0_31, %c0_32, %c0_33] : memref<1x1x4xf32, #tpu.memory_space<vmem>>, vector<1x1x4xf32>
      %41 = vector.shape_cast %40 : vector<1x1x4xf32> to vector<1x4xf32>
      %42 = vector.shape_cast %39 : vector<1x4xf32> to vector<1x1x4xf32>
      tpu.vector_store %arg7[%c0_31, %c0_32, %c0_33], %42 {strides = array<i32>} : memref<1x1x4xf32, #tpu.memory_space<vmem>>, vector<1x1x4xf32>,
    } else {
    }
    return
  }
  func.func @transform_0(%arg0: i32, %arg1: i32) -> (i32, i32, i32) {
    %c0_i32 = arith.constant 0 : i32
    %c0_i32_0 = arith.constant 0 : i32
    return %arg0, %c0_i32, %arg1 : i32, i32, i32
  }
  func.func @transform_1(%arg0: i32, %arg1: i32) -> (i32, i32) {
    %c0_i32 = arith.constant 0 : i32
    %c0_i32_0 = arith.constant 0 : i32
    %c0_i32_1 = arith.constant 0 : i32
    return %c0_i32, %c0_i32_0 : i32, i32
  }
  func.func @transform_2(%arg0: i32, %arg1: i32) -> (i32, i32) {
    %c0_i32 = arith.constant 0 : i32
    %c0_i32_0 = arith.constant 0 : i32
    %c0_i32_1 = arith.constant 0 : i32
    return %c0_i32, %c0_i32_0 : i32, i32
  }
  func.func @transform_3(%arg0: i32, %arg1: i32) -> (i32, i32) {
    %c0_i32 = arith.constant 0 : i32
    %c0_i32_0 = arith.constant 0 : i32
    %c0_i32_1 = arith.constant 0 : i32
    return %c0_i32, %c0_i32_0 : i32, i32
  }
  func.func @transform_4(%arg0: i32, %arg1: i32) -> (i32, i32) {
    %c0_i32 = arith.constant 0 : i32
    %c0_i32_0 = arith.constant 0 : i32
    %c0_i32_1 = arith.constant 0 : i32
    return %c0_i32, %c0_i32_0 : i32, i32
  }
  func.func @transform_5(%arg0: i32, %arg1: i32) -> (i32, i32, i32) {
    %c0_i32 = arith.constant 0 : i32
    %c0_i32_0 = arith.constant 0 : i32
    %c0_i32_1 = arith.constant 0 : i32
    return %arg0, %c0_i32, %c0_i32_0 : i32, i32, i32
  }
}

</mosaic_0001>

<llo_original>
// kernel: tpu_custom_call.1
$region0: #{tpu_custom_call.1}
  #allocation0 [shape = 'u32[]', space=smem, size = 0x4, offset = 0x4, fixed_abs, tag = 'smem constant byte address 0x4 - core index']
  #allocation1 [shape = 'u32[144,128]{1,0:T(1,128)}', space=vmem, size = 0x12000, scoped, tag = 'internal scratch']
  #allocation2 [shape = 'f32[1,4]{1,0:T(1,128)}', space=vmem, size = 0x200, scoped, tag = 'scratch operand']
  #allocation3 [shape = 'f32[1,4]{1,0:T(1,128)}', space=vmem, size = 0x200, scoped, tag = 'scratch operand']
  #allocation4 [shape = 'f32[1,1]{1,0:T(1,128)S(1)}', space=vmem, size = 0x200, scoped, tag = 'scoped memory for tpu_custom_call.1']
  %s0 = inlined_call_operand.hbm [shape: f32[2,4,256], index: 0, kind: input, shape index: {}]
  %s1 = inlined_call_operand.vmem [shape: f32[4,1], index: 1, kind: input, shape index: {}]
  %s2 = inlined_call_operand.<no memory space> [shape: f32[1,1], index: 2, kind: input, shape index: {}]
  %s3 = inlined_call_operand.vmem [shape: f32[1,4], index: 3, kind: input, shape index: {}]
  %s4 = inlined_call_operand.vmem [shape: f32[1,4], index: 4, kind: input, shape index: {}]
  %s5 = inlined_call_operand.hbm [shape: f32[2,1,4], index: 5, kind: output, shape index: {}]
  %s6 = sld [smem:[#allocation0]]
  $region65: #{tpu_custom_call.1} parent=0
    _
  %s8 = ssub.s32 1, %s6
  %s9 = scalar_select 0, %s8, %s6
  %v10 = vstv %s2
  %11 = vst [vmem:[#allocation4] sm:$0x1] %v10
  $region1: #{tpu_custom_call.1} parent=0
    #allocation5 [shape = 'u8[8192]{0}', space=vmem, size = 0x2000, scoped, tag = 'input window, operand 0']
    #allocation6 [shape = 's32[2]{0}', space=sflag, size = 0x8, scoped, tag = 'scoped memory for tpu_custom_call.1']
    #allocation7 [shape = 's32[2]{0}', space=sflag, size = 0x8, scoped, tag = 'scoped memory for tpu_custom_call.1']
    #allocation8 [shape = 'u8[1024]{0}', space=vmem, size = 0x400, scoped, tag = 'output window, operand 0']
    %12 = vsyncpa [#allocation6], 0
    %s13 = scalar_lea.sflag [#allocation6], 1
    %14 = vsyncpa %s13, 0
    %15 = vsyncpa [#allocation7], 0
    %s16 = scalar_lea.sflag [#allocation7], 1
    %17 = vsyncpa %s16, 0
    loop: start=0, step=1, limit=4
    $region2: #{tpu_custom_call.1} parent=1 // loop_pre_header
      _
    $region3: #{tpu_custom_call.1} parent=1 // loop_header
      %s19 = sphi 0, %s23
      %p20 = scmp.ge.s32.totalorder %s19, 4
      %s26 = sphi 0, %s38
      %s27 = sphi 0, %s34
      %s28 = sphi 0, %s26
      %s29 = sphi 0, %s27
      %s30 = sphi 0, %s28
      %s31 = sphi 0, %s29
      %s43 = sphi 0, %s45
      %s46 = sphi 0, %s43
      %s47 = sphi 0, %s46
      %s63 = sphi 0, %s47
      %s67 = sphi 0, %s67
      %s69 = sphi 0, %s67
      %s70 = sphi 0, %s69
      %s84 = sphi 0, %s70
      %s88 = sphi 0, %s88
      %s90 = sphi 0, %s88
      %s91 = sphi 0, %s90
      %s105 = sphi 0, %s91
      %s109 = sphi 0, %s109
      %s111 = sphi 0, %s109
      %s112 = sphi 0, %s111
      %s126 = sphi 0, %s112
      %s130 = sphi 0, %s130
      %s132 = sphi 0, %s130
      %s133 = sphi 0, %s132
      %s147 = sphi 0, %s133
      %s153 = sphi 0, %s155
      %s156 = sphi 0, %s153
      %s157 = sphi 0, %s156
      %s173 = sphi 0, %s157
    $region4: #{tpu_custom_call.1} parent=1 // loop_header_branch
      %22 = sbr.rel (%p20) target = $region8
    $region5: #{tpu_custom_call.1} parent=1 // loop_body
      %s24 = ssub.s32 %s19, 1
      %s25 = ssub.s32 %s19, 2
      %s32 = sadd.s32 1, %s27
      %p33 = scmp.ge.s32.totalorder %s32, 1
      %s34 = scalar_select %p33, 0, %s32
      %s35 = sadd.s32 1, %s26
      %s36 = scalar_select %p33, %s35, %s26
      %p37 = scmp.ge.s32.totalorder %s36, 2
      %s38 = scalar_select %p37, 0, %s36
      %s39 = ssub.s32 %s26, %s38
      %s40 = ssub.s32 %s27, %s34
      %s41 = sor.u32 %s39, %s40
      %p42 = scmp.eq.s32.totalorder %s41, 0
      %s44 = sadd.s32 %s43, 1
      %s45 = scalar_select %p42, %s43, %s44
      %p48 = pneg %p42
      %p49 = scmp.eq.s32.totalorder %s19, 1
      %p50 = por %p48, %p49
      %p51 = scmp.ne.s32.totalorder %s43, %s46
      %p52 = scmp.eq.s32.totalorder %s19, 0
      %p53 = por %p51, %p52
      %p54 = scmp.ne.s32.totalorder %s43, %s46
      %p55 = scmp.eq.s32.totalorder %s24, 1
      %p56 = por %p54, %p55
      %p57 = scmp.ne.s32.totalorder %s46, %s47
      %p58 = scmp.eq.s32.totalorder %s24, 0
      %p59 = por %p57, %p58
      %p60 = scmp.ne.s32.totalorder %s46, %s47
      %p61 = scmp.eq.s32.totalorder %s25, 1
      %p62 = por %p60, %p61
      %p64 = scmp.ne.s32.totalorder %s47, %s63
      %p65 = scmp.eq.s32.totalorder %s25, 0
      %p66 = por %p64, %p65
      %s68 = sadd.s32 %s67, 1
      %p71 = scmp.eq.s32.totalorder %s19, 1
      %p72 = scmp.ne.s32.totalorder %s67, %s69
      %p73 = scmp.eq.s32.totalorder %s19, 0
      %p74 = por %p72, %p73
      %p75 = scmp.ne.s32.totalorder %s67, %s69
      %p76 = scmp.eq.s32.totalorder %s24, 1
      %p77 = por %p75, %p76
      %p78 = scmp.ne.s32.totalorder %s69, %s70
      %p79 = scmp.eq.s32.totalorder %s24, 0
      %p80 = por %p78, %p79
      %p81 = scmp.ne.s32.totalorder %s69, %s70
      %p82 = scmp.eq.s32.totalorder %s25, 1
      %p83 = por %p81, %p82
      %p85 = scmp.ne.s32.totalorder %s70, %s84
      %p86 = scmp.eq.s32.totalorder %s25, 0
      %p87 = por %p85, %p86
      %s89 = sadd.s32 %s88, 1
      %p92 = scmp.eq.s32.totalorder %s19, 1
      %p93 = scmp.ne.s32.totalorder %s88, %s90
      %p94 = scmp.eq.s32.totalorder %s19, 0
      %p95 = por %p93, %p94
      %p96 = scmp.ne.s32.totalorder %s88, %s90
      %p97 = scmp.eq.s32.totalorder %s24, 1
      %p98 = por %p96, %p97
      %p99 = scmp.ne.s32.totalorder %s90, %s91
      %p100 = scmp.eq.s32.totalorder %s24, 0
      %p101 = por %p99, %p100
      %p102 = scmp.ne.s32.totalorder %s90, %s91
      %p103 = scmp.eq.s32.totalorder %s25, 1
      %p104 = por %p102, %p103
      %p106 = scmp.ne.s32.totalorder %s91, %s105
      %p107 = scmp.eq.s32.totalorder %s25, 0
      %p108 = por %p106, %p107
      %s110 = sadd.s32 %s109, 1
      %p113 = scmp.eq.s32.totalorder %s19, 1
      %p114 = scmp.ne.s32.totalorder %s109, %s111
      %p115 = scmp.eq.s32.totalorder %s19, 0
      %p116 = por %p114, %p115
      %p117 = scmp.ne.s32.totalorder %s109, %s111
      %p118 = scmp.eq.s32.totalorder %s24, 1
      %p119 = por %p117, %p118
      %p120 = scmp.ne.s32.totalorder %s111, %s112
      %p121 = scmp.eq.s32.totalorder %s24, 0
      %p122 = por %p120, %p121
      %p123 = scmp.ne.s32.totalorder %s111, %s112
      %p124 = scmp.eq.s32.totalorder %s25, 1
      %p125 = por %p123, %p124
      %p127 = scmp.ne.s32.totalorder %s112, %s126
      %p128 = scmp.eq.s32.totalorder %s25, 0
      %p129 = por %p127, %p128
      %s131 = sadd.s32 %s130, 1
      %p134 = scmp.eq.s32.totalorder %s19, 1
      %p135 = scmp.ne.s32.totalorder %s130, %s132
      %p136 = scmp.eq.s32.totalorder %s19, 0
      %p137 = por %p135, %p136
      %p138 = scmp.ne.s32.totalorder %s130, %s132
      %p139 = scmp.eq.s32.totalorder %s24, 1
      %p140 = por %p138, %p139
      %p141 = scmp.ne.s32.totalorder %s132, %s133
      %p142 = scmp.eq.s32.totalorder %s24, 0
      %p143 = por %p141, %p142
      %p144 = scmp.ne.s32.totalorder %s132, %s133
      %p145 = scmp.eq.s32.totalorder %s25, 1
      %p146 = por %p144, %p145
      %p148 = scmp.ne.s32.totalorder %s133, %s147
      %p149 = scmp.eq.s32.totalorder %s25, 0
      %p150 = por %p148, %p149
      %s151 = ssub.s32 %s26, %s38
      %p152 = scmp.eq.s32.totalorder %s151, 0
      %s154 = sadd.s32 %s153, 1
      %s155 = scalar_select %p152, %s153, %s154
      %p158 = pneg %p152
      %p159 = scmp.eq.s32.totalorder %s19, 1
      %p160 = por %p158, %p159
      %p161 = scmp.ne.s32.totalorder %s153, %s156
      %p162 = scmp.eq.s32.totalorder %s19, 0
      %p163 = por %p161, %p162
      %p164 = scmp.ne.s32.totalorder %s153, %s156
      %p165 = scmp.eq.s32.totalorder %s24, 1
      %p166 = por %p164, %p165
      %p167 = scmp.ne.s32.totalorder %s156, %s157
      %p168 = scmp.eq.s32.totalorder %s24, 0
      %p169 = por %p167, %p168
      %p170 = scmp.ne.s32.totalorder %s156, %s157
      %p171 = scmp.eq.s32.totalorder %s25, 1
      %p172 = por %p170, %p171
      %p174 = scmp.ne.s32.totalorder %s157, %s173
      %p175 = scmp.eq.s32.totalorder %s25, 0
      %p176 = por %p174, %p175
      %p177 = scmp.le.s32.totalorder 1, %s19
      %p178 = scmp.lt.s32.totalorder %s19, 3
      %p179 = pnand %p177, %p178
      %p180 = pneg %p179
      // Predicated region
      $region9: #{tpu_custom_call.1} parent=5 // pred_check
        _
      $region10: #{tpu_custom_call.1} parent=5 // pred_check_branch
        %182 = sbr.rel (%p179) target = $region12
      $region11: #{tpu_custom_call.1} parent=5 // pred_region
        %s183 = ssub.s32 %s19, 1
        // Predicated region
        $region13: #{tpu_custom_call.1} parent=11 // pred_check
          %p184 = pneg %p80
        $region14: #{tpu_custom_call.1} parent=11 // pred_check_branch
          %186 = sbr.rel (%p184) target = $region16
        $region15: #{tpu_custom_call.1} parent=11 // pred_region
          _
        $region16: #{tpu_custom_call.1} parent=11 // pred_fallthru
          _
        // Predicated region
        $region17: #{tpu_custom_call.1} parent=11 // pred_check
          %p187 = pneg %p101
        $region18: #{tpu_custom_call.1} parent=11 // pred_check_branch
          %189 = sbr.rel (%p187) target = $region20
        $region19: #{tpu_custom_call.1} parent=11 // pred_region
          _
        $region20: #{tpu_custom_call.1} parent=11 // pred_fallthru
          _
        // Predicated region
        $region21: #{tpu_custom_call.1} parent=11 // pred_check
          %p190 = pneg %p122
        $region22: #{tpu_custom_call.1} parent=11 // pred_check_branch
          %192 = sbr.rel (%p190) target = $region24
        $region23: #{tpu_custom_call.1} parent=11 // pred_region
          _
        $region24: #{tpu_custom_call.1} parent=11 // pred_fallthru
          _
        // Predicated region
        $region25: #{tpu_custom_call.1} parent=11 // pred_check
          %p193 = pneg %p143
        $region26: #{tpu_custom_call.1} parent=11 // pred_check_branch
          %195 = sbr.rel (%p193) target = $region28
        $region27: #{tpu_custom_call.1} parent=11 // pred_region
          _
        $region28: #{tpu_custom_call.1} parent=11 // pred_fallthru
          _
      $region12: #{tpu_custom_call.1} parent=5 // pred_fallthru
        _
      %p196 = scmp.lt.s32.totalorder %s19, 2
      // Predicated region
      $region29: #{tpu_custom_call.1} parent=5 // pred_check
        %p197 = pneg %p196
      $region30: #{tpu_custom_call.1} parent=5 // pred_check_branch
        %199 = sbr.rel (%p197) target = $region32
      $region31: #{tpu_custom_call.1} parent=5 // pred_region
        // Predicated region
        $region33: #{tpu_custom_call.1} parent=31 // pred_check
          %p200 = pneg %p53
        $region34: #{tpu_custom_call.1} parent=31 // pred_check_branch
          %202 = sbr.rel (%p200) target = $region36
        $region35: #{tpu_custom_call.1} parent=31 // pred_region
          %s203 = sand.u32 %s43, 1
          %s204 = scalar_lea.sflag [#allocation6], %s203
          %s205 = sand.u32 %s43, 1
          %s206 = smul.addr %s205, 8
          %s207 = scalar_lea.vmem [#allocation5], %s206
          %s208 = smul.u32 2, %s27
          %s210 = ssub.s32 128, 128
          %211 = vsyncadd %s204, %s210
          %s212 = smul.addr %s26, 2
          %s213 = sadd.s32 %s208, %s212
          %s214 = smul.addr %s213, 64
          %s215 = scalar_lea.hbm %s0, %s214
          %s217 = sshll.u32 %s207, 4
          %s218 = int_to_ptr.vmem [resolvable:$true] %s217
          %220 = dma.hbm_to_vmem [thread:$0]  %s215, 128, %s218, %s204
        $region36: #{tpu_custom_call.1} parent=31 // pred_fallthru
          _
      $region32: #{tpu_custom_call.1} parent=5 // pred_fallthru
        _
      %p221 = scmp.le.s32.totalorder 1, %s19
      %p222 = scmp.lt.s32.totalorder %s19, 3
      %p223 = pnand %p221, %p222
      %p224 = pneg %p223
      // Predicated region
      $region37: #{tpu_custom_call.1} parent=5 // pred_check
        _
      $region38: #{tpu_custom_call.1} parent=5 // pred_check_branch
        %226 = sbr.rel (%p223) target = $region40
      $region39: #{tpu_custom_call.1} parent=5 // pred_region
        %s227 = ssub.s32 %s19, 1
        %s228 = sand.u32 %s46, 1
        %s229 = scalar_lea.sflag [#allocation6], %s228
        %s230 = sand.u32 %s46, 1
        %s231 = smul.addr %s230, 8
        %s232 = scalar_lea.vmem [#allocation5], %s231
        // Predicated region
        $region41: #{tpu_custom_call.1} parent=39 // pred_check
          %p233 = pneg %p59
        $region42: #{tpu_custom_call.1} parent=39 // pred_check_branch
          %235 = sbr.rel (%p233) target = $region44
        $region43: #{tpu_custom_call.1} parent=39 // pred_region
          %236 = dma.done %s229, 128
        $region44: #{tpu_custom_call.1} parent=39 // pred_fallthru
          _
        %s237 = sand.u32 %s46, 1
        %s238 = scalar_lea.sflag [#allocation6], %s237
        %s239 = sand.u32 %s46, 1
        %s240 = smul.addr %s239, 8
        %s241 = scalar_lea.vmem [#allocation5], %s240
        %p242 = pneg %p59
        %p243 = pneg %p56
        %p244 = pneg %p80
        %p245 = pneg %p77
        %p246 = pneg %p101
        %p247 = pneg %p98
        %p248 = pneg %p122
        %p249 = pneg %p119
        %p250 = pneg %p143
        %p251 = pneg %p140
        %p252 = pneg %p169
        %p253 = pneg %p166
        %s254 = sand.u32 %s156, 1
        %s255 = scalar_lea.sflag [#allocation7], %s254
        %s256 = sand.u32 %s156, 1
        %s257 = scalar_lea.vmem [#allocation8], %s256
        %s258 = smul.u32 2, %s29
        %p259 = scmp.eq.s32.totalorder %s29, 0
        // Predicated region
        $region45: #{tpu_custom_call.1} parent=39 // pred_check
          %p260 = pneg %p259
        $region46: #{tpu_custom_call.1} parent=39 // pred_check_branch
          %262 = sbr.rel (%p260) target = $region48
        $region47: #{tpu_custom_call.1} parent=39 // pred_region
          %vm263 = vcmask 24576
          %264 = vst.msk [vmem:[#allocation2] sm:$0x1] %vm263, 0.0
          %265 = vst.msk [vmem:[#allocation3] sm:$0x1] %vm263, -inf
        $region48: #{tpu_custom_call.1} parent=39 // pred_fallthru
          _
        %v266 = vld [vmem:[%s232] sm:$0xff]
        %v267 = vld [vmem:[#allocation2] sm:$0x1]
        %v269 = vcombine.high %v266, %v266
        %vm271 = vcmask 1043456
        %v272 = vsel %vm271, %v266, 0.0
        %v273 = vsel %vm271, %v269, 0.0
        %v274 = vadd.f32 %v272, %v273
        %275 = vadd.xlane.f32.xlu0 %v274
        %v276 = vpop.xlane.xlu0 %275
        %v278 = vlaneseq
        %v279 = vshrl.u32 %v278, 7
        %v280 = vsub.s32 0, %v279
        %v281 = vrot.slane %v276, %v280
        %v282 = vlaneseq
        %v283 = vshrl.u32 %v282, 7
        %v284 = vsub.s32 1, %v283
        %v285 = vrot.slane %v276, %v284
        %v286 = vlaneseq
        %v287 = vshrl.u32 %v286, 7
        %v288 = vsub.s32 2, %v287
        %v289 = vrot.slane %v276, %v288
        %v290 = vlaneseq
        %v291 = vshrl.u32 %v290, 7
        %v292 = vsub.s32 3, %v291
        %v293 = vrot.slane %v276, %v292
        %v294 = vcombine.low %v281, %v285
        %v295 = vcombine.low %v289, %v293
        %v297 = vunpack.c.l.s4 1966171168
        %v298 = vunpack.c.0.s8 %v297
        %v299 = vlaneseq
        %v300 = vshrl.u32 %v299, 7
        %v301 = vsub.s32 %v298, %v300
        %v302 = vrot.slane %v294, %v301
        %v304 = vunpack.c.l.s4 1966171168
        %v305 = vunpack.c.0.s8 %v304
        %v306 = vlaneseq
        %v307 = vshrl.u32 %v306, 7
        %v308 = vsub.s32 %v305, %v307
        %v309 = vrot.slane %v295, %v308
        %v310 = vcombine.low %v302, %v309
        %v312 = vunpack.c.l.s4 1966171168
        %v313 = vunpack.c.0.s8 %v312
        %v314 = vlaneseq
        %v315 = vshrl.u32 %v314, 7
        %v316 = vsub.s32 %v313, %v315
        %v317 = vrot.slane %v310, %v316
        %318 = vset.pattern.permute.xlu0 0
        %319 = vperm.xlu0 %318, %v317
        %v320 = vpop.permute.xlu0 %319
        %v321 = vlaneseq
        %v322 = vand.u32 %v321, 127
        %v323 = vlaneseq
        %v324 = vshrl.u32 %v323, 7
        %v325 = vsub.s32 %v322, %v324
        %v326 = vrot.slane %v320, %v325
        %v328 = vunpack.c.l.s4 1966171168
        %v329 = vunpack.c.0.s8 %v328
        %v330 = vlaneseq
        %v331 = vshrl.u32 %v330, 7
        %v332 = vsub.s32 %v329, %v331
        %v333 = vrot.slane %v326, %v332
        %v335 = vunpack.c.l.s4 1966171168
        %v336 = vunpack.c.0.s8 %v335
        %v337 = vlaneseq
        %v338 = vshrl.u32 %v337, 7
        %v339 = vsub.s32 %v336, %v338
        %v340 = vrot.slane %v333, %v339
        %v342 = vadd.f32 %v267, %v340
        %vm343 = vcmask 24576
        %344 = vst.msk [vmem:[#allocation2] sm:$0x1] %vm343, %v342
        %v345 = vld [vmem:[#allocation3] sm:$0x1]
        %v346 = vsel %vm271, %v266, -inf
        %v347 = vsel %vm271, %v269, -inf
        %v348 = vmax.f32 %v346, %v347
        %349 = vmax.xlane.f32.xlu0 %v348
        %v350 = vpop.xlane.xlu0 %349
        %v352 = vlaneseq
        %v353 = vshrl.u32 %v352, 7
        %v354 = vsub.s32 0, %v353
        %v355 = vrot.slane %v350, %v354
        %v356 = vlaneseq
        %v357 = vshrl.u32 %v356, 7
        %v358 = vsub.s32 1, %v357
        %v359 = vrot.slane %v350, %v358
        %v360 = vlaneseq
        %v361 = vshrl.u32 %v360, 7
        %v362 = vsub.s32 2, %v361
        %v363 = vrot.slane %v350, %v362
        %v364 = vlaneseq
        %v365 = vshrl.u32 %v364, 7
        %v366 = vsub.s32 3, %v365
        %v367 = vrot.slane %v350, %v366
        %v368 = vcombine.low %v355, %v359
        %v369 = vcombine.low %v363, %v367
        %v371 = vunpack.c.l.s4 1966171168
        %v372 = vunpack.c.0.s8 %v371
        %v373 = vlaneseq
        %v374 = vshrl.u32 %v373, 7
        %v375 = vsub.s32 %v372, %v374
        %v376 = vrot.slane %v368, %v375
        %v378 = vunpack.c.l.s4 1966171168
        %v379 = vunpack.c.0.s8 %v378
        %v380 = vlaneseq
        %v381 = vshrl.u32 %v380, 7
        %v382 = vsub.s32 %v379, %v381
        %v383 = vrot.slane %v369, %v382
        %v384 = vcombine.low %v376, %v383
        %v386 = vunpack.c.l.s4 1966171168
        %v387 = vunpack.c.0.s8 %v386
        %v388 = vlaneseq
        %v389 = vshrl.u32 %v388, 7
        %v390 = vsub.s32 %v387, %v389
        %v391 = vrot.slane %v384, %v390
        %392 = vset.pattern.permute.xlu0 0
        %393 = vperm.xlu0 %392, %v391
        %v394 = vpop.permute.xlu0 %393
        %v395 = vlaneseq
        %v396 = vshrl.u32 %v395, 7
        %v397 = vsub.s32 %v322, %v396
        %v398 = vrot.slane %v394, %v397
        %v400 = vunpack.c.l.s4 1966171168
        %v401 = vunpack.c.0.s8 %v400
        %v402 = vlaneseq
        %v403 = vshrl.u32 %v402, 7
        %v404 = vsub.s32 %v401, %v403
        %v405 = vrot.slane %v398, %v404
        %v407 = vunpack.c.l.s4 1966171168
        %v408 = vunpack.c.0.s8 %v407
        %v409 = vlaneseq
        %v410 = vshrl.u32 %v409, 7
        %v411 = vsub.s32 %v408, %v410
        %v412 = vrot.slane %v405, %v411
        %v414 = vmax.f32 %v345, %v412
        %415 = vst.msk [vmem:[#allocation3] sm:$0x1] %vm343, %v414
        // Predicated region
        $region49: #{tpu_custom_call.1} parent=39 // pred_check
          %p416 = pneg %p259
        $region50: #{tpu_custom_call.1} parent=39 // pred_check_branch
          %418 = sbr.rel (%p416) target = $region52
        $region51: #{tpu_custom_call.1} parent=39 // pred_region
          %v419 = vld [vmem:[#allocation2] sm:$0x1]
          %v420 = vmul.f32 %v419, 0.00390625
          %v421 = vld [vmem:[#allocation3] sm:$0x1]
          %v423 = vlaneseq
          %v424 = vshrl.u32 %v423, 7
          %v425 = vsub.s32 0, %v424
          %v426 = vrot.slane %v421, %v425
          %vm428 = vcmask 1040384
          %v429 = vsel %vm428, %v420, %v426
          %v430 = vld [vmem:[%s1] sm:$0xf]
          %v431 = vld [vmem:[#allocation4] sm:$0x1]
          %v433 = vlaneseq
          %v434 = vshrl.u32 %v433, 7
          %v435 = vsub.s32 0, %v434
          %v436 = vrot.slane %v431, %v435
          %vm438 = vcmask 31744
          %v440 = vsel %vm438, %v429, 0
          %v443 = vsel %vm271, %v430, 0
          %445 = vmatprep.subr.mxu0 0.0
          %446 = vmatpush1.msra.mxu0 %v443
          %447 = vmatprep.subr.mxu0 0.0
          %448 = vmatpush1.msra.mxu0 0.0
          %449 = vmatprep.subr.mxu0 0.0
          %450 = vmatpush1.msra.mxu0 0.0
          %451 = vmatprep.subr.mxu0 0.0
          %452 = vmatpush1.msra.mxu0 0.0
          %453 = vmatprep.subr.mxu0 0.0
          %454 = vmatpush1.msra.mxu0 0.0
          %455 = vmatprep.subr.mxu0 0.0
          %456 = vmatpush1.msra.mxu0 0.0
          %457 = vmatprep.subr.mxu0 0.0
          %458 = vmatpush1.msra.mxu0 0.0
          %459 = vmatprep.subr.mxu0 0.0
          %460 = vmatpush1.msra.mxu0 0.0
          %461 = vmatprep.subr.mxu0 0.0
          %462 = vmatpush1.msra.mxu0 0.0
          %463 = vmatprep.subr.mxu0 0.0
          %464 = vmatpush1.msra.mxu0 0.0
          %465 = vmatprep.subr.mxu0 0.0
          %466 = vmatpush1.msra.mxu0 0.0
          %467 = vmatprep.subr.mxu0 0.0
          %468 = vmatpush1.msra.mxu0 0.0
          %469 = vmatprep.subr.mxu0 0.0
          %470 = vmatpush1.msra.mxu0 0.0
          %471 = vmatprep.subr.mxu0 0.0
          %472 = vmatpush1.msra.mxu0 0.0
          %473 = vmatprep.subr.mxu0 0.0
          %474 = vmatpush1.msra.mxu0 0.0
          %475 = vmatprep.subr.mxu0 0.0
          %476 = vmatpush1.msra.mxu0 0.0
          %477 = vmatprep.subr.mxu0 0.0
          %478 = vmatpush1.msra.mxu0 0.0
          %479 = vmatprep.subr.mxu0 0.0
          %480 = vmatpush1.msra.mxu0 0.0
          %481 = vmatprep.subr.mxu0 0.0
          %482 = vmatpush1.msra.mxu0 0.0
          %483 = vmatprep.subr.mxu0 0.0
          %484 = vmatpush1.msra.mxu0 0.0
          %485 = vmatprep.subr.mxu0 0.0
          %486 = vmatpush1.msra.mxu0 0.0
          %487 = vmatprep.subr.mxu0 0.0
          %488 = vmatpush1.msra.mxu0 0.0
          %489 = vmatprep.subr.mxu0 0.0
          %490 = vmatpush1.msra.mxu0 0.0
          %491 = vmatprep.subr.mxu0 0.0
          %492 = vmatpush1.msra.mxu0 0.0
          %493 = vmatprep.subr.mxu0 0.0
          %494 = vmatpush1.msra.mxu0 0.0
          %495 = vmatprep.subr.mxu0 0.0
          %496 = vmatpush1.msra.mxu0 0.0
          %497 = vmatprep.subr.mxu0 0.0
          %498 = vmatpush1.msra.mxu0 0.0
          %499 = vmatprep.subr.mxu0 0.0
          %500 = vmatpush1.msra.mxu0 0.0
          %501 = vmatprep.subr.mxu0 0.0
          %502 = vmatpush1.msra.mxu0 0.0
          %503 = vmatprep.subr.mxu0 0.0
          %504 = vmatpush1.msra.mxu0 0.0
          %505 = vmatprep.subr.mxu0 0.0
          %506 = vmatpush1.msra.mxu0 0.0
          %507 = vmatprep.subr.mxu0 0.0
          %508 = vmatpush1.msra.mxu0 0.0
          %509 = vmatprep.mubr.f32.mxu0 0.0
          %510 = vmatmul.mubr.f32.gmra.mrb[0].mxu0 %v440
          %v511 = vpop.f32.mrb[0].mxu0
          %v512 = vadd.f32 %v436, %v511
          %v513 = vpop.f32.mrb[0].mxu0
          %514 = vdwg.mxu0
          %v515 = vmax.f32 %v512, 0.0
          %v516 = vld [vmem:[%s3] sm:$0x1]
          %v517 = vld [vmem:[%s4] sm:$0x1]
          %v519 = vlaneseq
          %v520 = vshrl.u32 %v519, 7
          %v521 = vsub.s32 0, %v520
          %v522 = vrot.slane %v517, %v521
          %vm524 = vcmask 7168
          %v526 = vsel %vm524, %v515, 0
          %v529 = vsel %vm428, %v516, 0
          %531 = vmatprep.subr.mxu0 0.0
          %532 = vmatpush1.msra.mxu0 %v529
          %533 = vmatprep.subr.mxu0 0.0
          %534 = vmatpush1.msra.mxu0 0.0
          %535 = vmatprep.subr.mxu0 0.0
          %536 = vmatpush1.msra.mxu0 0.0
          %537 = vmatprep.subr.mxu0 0.0
          %538 = vmatpush1.msra.mxu0 0.0
          %539 = vmatprep.subr.mxu0 0.0
          %540 = vmatpush1.msra.mxu0 0.0
          %541 = vmatprep.subr.mxu0 0.0
          %542 = vmatpush1.msra.mxu0 0.0
          %543 = vmatprep.subr.mxu0 0.0
          %544 = vmatpush1.msra.mxu0 0.0
          %545 = vmatprep.subr.mxu0 0.0
          %546 = vmatpush1.msra.mxu0 0.0
          %547 = vmatprep.subr.mxu0 0.0
          %548 = vmatpush1.msra.mxu0 0.0
          %549 = vmatprep.subr.mxu0 0.0
          %550 = vmatpush1.msra.mxu0 0.0
          %551 = vmatprep.subr.mxu0 0.0
          %552 = vmatpush1.msra.mxu0 0.0
          %553 = vmatprep.subr.mxu0 0.0
          %554 = vmatpush1.msra.mxu0 0.0
          %555 = vmatprep.subr.mxu0 0.0
          %556 = vmatpush1.msra.mxu0 0.0
          %557 = vmatprep.subr.mxu0 0.0
          %558 = vmatpush1.msra.mxu0 0.0
          %559 = vmatprep.subr.mxu0 0.0
          %560 = vmatpush1.msra.mxu0 0.0
          %561 = vmatprep.subr.mxu0 0.0
          %562 = vmatpush1.msra.mxu0 0.0
          %563 = vmatprep.subr.mxu0 0.0
          %564 = vmatpush1.msra.mxu0 0.0
          %565 = vmatprep.subr.mxu0 0.0
          %566 = vmatpush1.msra.mxu0 0.0
          %567 = vmatprep.subr.mxu0 0.0
          %568 = vmatpush1.msra.mxu0 0.0
          %569 = vmatprep.subr.mxu0 0.0
          %570 = vmatpush1.msra.mxu0 0.0
          %571 = vmatprep.subr.mxu0 0.0
          %572 = vmatpush1.msra.mxu0 0.0
          %573 = vmatprep.subr.mxu0 0.0
          %574 = vmatpush1.msra.mxu0 0.0
          %575 = vmatprep.subr.mxu0 0.0
          %576 = vmatpush1.msra.mxu0 0.0
          %577 = vmatprep.subr.mxu0 0.0
          %578 = vmatpush1.msra.mxu0 0.0
          %579 = vmatprep.subr.mxu0 0.0
          %580 = vmatpush1.msra.mxu0 0.0
          %581 = vmatprep.subr.mxu0 0.0
          %582 = vmatpush1.msra.mxu0 0.0
          %583 = vmatprep.subr.mxu0 0.0
          %584 = vmatpush1.msra.mxu0 0.0
          %585 = vmatprep.subr.mxu0 0.0
          %586 = vmatpush1.msra.mxu0 0.0
          %587 = vmatprep.subr.mxu0 0.0
          %588 = vmatpush1.msra.mxu0 0.0
          %589 = vmatprep.subr.mxu0 0.0
          %590 = vmatpush1.msra.mxu0 0.0
          %591 = vmatprep.subr.mxu0 0.0
          %592 = vmatpush1.msra.mxu0 0.0
          %593 = vmatprep.subr.mxu0 0.0
          %594 = vmatpush1.msra.mxu0 0.0
          %595 = vmatprep.mubr.f32.mxu0 0.0
          %596 = vmatmul.mubr.f32.gmra.mrb[0].mxu0 %v526
          %v597 = vpop.f32.mrb[0].mxu0
          %v598 = vadd.f32 %v522, %v597
          %v599 = vpop.f32.mrb[0].mxu0
          %600 = vdwg.mxu0
          %v602 = vrot.slane %v598, 1
          %v604 = vadd.f32 %v598, %v602
          %v605 = vxor.u32 %v604, 2147483648
          %v606 = vmul.f32 %v605, 1.442695
          %v607 = vpow.pop %v606
          %v608 = vadd.f32 %v607, 1.0
          %v609 = vrcp.pop %v608
          %v610 = vmul.f32 1.0, %v609
          %611 = vst.msk [vmem:[%s257] sm:$0x1] %vm343, %v610
        $region52: #{tpu_custom_call.1} parent=39 // pred_fallthru
          _
        %s612 = sand.u32 %s156, 1
        %s613 = scalar_lea.sflag [#allocation7], %s612
        %s614 = sand.u32 %s156, 1
        %s615 = scalar_lea.vmem [#allocation8], %s614
        // Predicated region
        $region53: #{tpu_custom_call.1} parent=39 // pred_check
          %p616 = pneg %p166
        $region54: #{tpu_custom_call.1} parent=39 // pred_check_branch
          %618 = sbr.rel (%p616) target = $region56
        $region55: #{tpu_custom_call.1} parent=39 // pred_region
          %s620 = ssub.s32 16, 16
          %621 = vsyncadd %s613, %s620
          %s622 = smul.addr %s28, 16
          %s623 = scalar_lea.hbm %s5, %s622
          %s625 = sshll.u32 %s615, 4
          %s626 = int_to_ptr.vmem [resolvable:$true] %s625
          %628 = dma.vmem_to_hbm [thread:$0]  %s626, 16, %s623, %s613
        $region56: #{tpu_custom_call.1} parent=39 // pred_fallthru
          _
      $region40: #{tpu_custom_call.1} parent=5 // pred_fallthru
        _
      %p629 = scmp.le.s32.totalorder 2, %s19
      // Predicated region
      $region57: #{tpu_custom_call.1} parent=5 // pred_check
        %p630 = pneg %p629
      $region58: #{tpu_custom_call.1} parent=5 // pred_check_branch
        %632 = sbr.rel (%p630) target = $region60
      $region59: #{tpu_custom_call.1} parent=5 // pred_region
        %s633 = ssub.s32 %s19, 2
        // Predicated region
        $region61: #{tpu_custom_call.1} parent=59 // pred_check
          %p634 = pneg %p172
        $region62: #{tpu_custom_call.1} parent=59 // pred_check_branch
          %636 = sbr.rel (%p634) target = $region64
        $region63: #{tpu_custom_call.1} parent=59 // pred_region
          %s637 = sand.u32 %s157, 1
          %s638 = scalar_lea.sflag [#allocation7], %s637
          %s639 = sand.u32 %s157, 1
          %s640 = scalar_lea.vmem [#allocation8], %s639
          %641 = dma.done %s638, 16
        $region64: #{tpu_custom_call.1} parent=59 // pred_fallthru
          _
      $region60: #{tpu_custom_call.1} parent=5 // pred_fallthru
        _
    $region6: #{tpu_custom_call.1} parent=1 // loop_footer
      %s23 = sadd.s32 1, %s19
    $region7: #{tpu_custom_call.1} parent=1 // loop_footer_branch
      %18 = sbr.rel target = $region3
    $region8: #{tpu_custom_call.1} parent=1 // loop_exit
      _
    %642 = vsyncpa [#allocation6], 1
    %s643 = scalar_lea.sflag [#allocation6], 1
    %644 = vsyncpa %s643, 1
    %645 = vsyncpa [#allocation7], 1
    %s646 = scalar_lea.sflag [#allocation7], 1
    %647 = vsyncpa %s646, 1

</llo_original>
